<compile_context>
chip_gen: v5e
topology: v5e:2x2
jax: 0.10.0
libtpu: 0.0.40
codegen_flags: <defaults>
</compile_context>

<pallas_src>
import functools

import jax
import jax.numpy as jnp
from jax.experimental import pallas as pl
from jax.experimental.pallas import tpu as pltpu


def _focal_kernel(pred_ref, target_ref, out_ref, *, gamma, alpha):
    x = pred_ref[...].astype(jnp.float32)
    t = target_ref[...].astype(jnp.float32)  # target.type_as(pred): compute in f32, cast on store

    # Shared transcendental: e = exp(-|x|) feeds both the sigmoid and the stable BCE tail.
    e = jnp.exp(-jnp.abs(x))
    inv_1pe = pl.reciprocal(1.0 + e)              # exact; approx=True would relax accuracy ~1e-3
    # sigmoid(x) = 1/(1+e) for x >= 0, e/(1+e) for x < 0  (select is free VPU filler)
    p = jnp.where(x >= 0.0, inv_1pe, e * inv_1pe)

    # pt = t*p + (1-t)*(1-p)
    pt = t * p + (1.0 - t) * (1.0 - p)
    u = 1.0 - pt

    g = float(gamma)
    if g == 0.0:
        u_pow = jnp.ones_like(u)
    elif float(g).is_integer() and 1.0 <= g <= 8.0:
        # small integer gamma -> a couple of VPU multiplies instead of exp+log on the EUP
        u_pow = u
        for _ in range(int(g) - 1):
            u_pow = u_pow * u
    else:
        u_pow = jnp.power(u, g)                   # general (fractional) gamma: EUP exp+log

    focal_weight = (alpha * t + (1.0 - alpha) * (1.0 - t)) * u_pow

    # Numerically stable binary_cross_entropy_with_logits (reduction='none'):
    #   max(x, 0) - x*t + log1p(exp(-|x|))
    bce = jnp.maximum(x, 0.0) - x * t + jnp.log1p(e)

    out_ref[...] = (bce * focal_weight).astype(out_ref.dtype)


def _cdiv(a, b):
    return -(-a // b)


def _round_up(a, b):
    return _cdiv(a, b) * b


def _choose_tile(extent, *, unit, cap, min_grid=4):
    """Pick a tile so that (a) we get >= min_grid grid steps when possible (v7x 2-TC split),
    (b) tile is a multiple of `unit` (32 sublanes / 1024 elems -> no sub-32-bit relayout),
    (c) tile <= cap (VMEM budget).  Small inputs degrade to one full-extent block, which is
    always a legal TPU block shape."""
    target = _round_up(_cdiv(extent, min_grid), unit)
    tile = min(cap, max(unit, target))
    if tile >= extent:
        tile = extent
    return tile


def focal_loss_with_sigmoid(pred, target, gamma=2.0, alpha=0.25, reduction="none",
                            *, lane_width=512, max_row_tile=1024):
    """Pallas TPU implementation of FocalLossWithSigmoid.forward (reduction glue in JAX).

    max_row_tile=1024 -> 2 MiB blocks (~12 MiB live, fits v5e default scoped VMEM);
    v7x users can pass max_row_tile=2048 (4 MiB blocks, ~25 MiB live, under the 32 MiB
    vmem_limit_bytes we request below).
    """
    assert pred.shape == target.shape
    assert lane_width % 128 == 0 and max_row_tile % 8 == 0
    orig_shape = pred.shape
    out_dtype = pred.dtype
    n = int(pred.size)

    kernel = functools.partial(_focal_kernel, gamma=float(gamma), alpha=float(alpha))
    cparams = pltpu.CompilerParams(
        # 1-D grid is embarrassingly parallel -> shards across the 2 TCs on v7x.
        dimension_semantics=("parallel",),
        # Safe on all generations (v5e/v6e physical 128 MiB, v7x 64 MiB); covers 4 MiB blocks.
        vmem_limit_bytes=32 * 1024 * 1024,
    )

    if n == 0:
        loss = jnp.zeros(orig_shape, out_dtype)
    elif n % lane_width == 0:
        # Fast path: pure (free) reshape to a lane-dense (rows, lane_width) layout; the last
        # grid step may be a partial block — no padding, no slicing.
        rows = n // lane_width
        row_tile = _choose_tile(rows, unit=32, cap=max_row_tile)
        pred2d = pred.reshape(rows, lane_width)
        target2d = target.reshape(rows, lane_width)       # native dtype, no wrapper cast
        out2d = pl.pallas_call(
            kernel,
            out_shape=jax.ShapeDtypeStruct((rows, lane_width), out_dtype),
            grid_spec=pltpu.PrefetchScalarGridSpec(
                num_scalar_prefetch=0,
                grid=(_cdiv(rows, row_tile),),
                in_specs=[
                    pl.BlockSpec((row_tile, lane_width), lambda i: (i, 0)),
                    pl.BlockSpec((row_tile, lane_width), lambda i: (i, 0)),
                ],
                out_specs=pl.BlockSpec((row_tile, lane_width), lambda i: (i, 0)),
            ),
            compiler_params=cparams,
        )(pred2d, target2d)
        loss = out2d.reshape(orig_shape)
    else:
        # General path: flat 1-D layout, contiguous blocks, partial final block.
        blk = _choose_tile(n, unit=8 * 128, cap=max_row_tile * lane_width)
        pred1d = pred.reshape(-1)
        target1d = target.reshape(-1)
        out1d = pl.pallas_call(
            kernel,
            out_shape=jax.ShapeDtypeStruct((n,), out_dtype),
            grid_spec=pltpu.PrefetchScalarGridSpec(
                num_scalar_prefetch=0,
                grid=(_cdiv(n, blk),),
                in_specs=[
                    pl.BlockSpec((blk,), lambda i: (i,)),
                    pl.BlockSpec((blk,), lambda i: (i,)),
                ],
                out_specs=pl.BlockSpec((blk,), lambda i: (i,)),
            ),
            compiler_params=cparams,
        )(pred1d, target1d)
        loss = out1d.reshape(orig_shape)

    # Reduction glue (same semantics as the PyTorch module); accumulate in f32.
    if reduction == "elementwise_mean":
        loss = jnp.mean(loss.astype(jnp.float32)).astype(out_dtype)
    elif reduction == "sum":
        loss = jnp.sum(loss.astype(jnp.float32)).astype(out_dtype)
    return loss


def _reference(pred, target, gamma=2.0, alpha=0.25):
    pred = pred.astype(jnp.float32)
    target = target.astype(jnp.float32)
    p = jax.nn.sigmoid(pred)
    pt = target * p + (1 - target) * (1 - p)
    fw = (alpha * target + (1 - alpha) * (1 - target)) * (1.0 - pt) ** gamma
    bce = jnp.maximum(pred, 0.0) - pred * target + jnp.log1p(jnp.exp(-jnp.abs(pred)))
    return bce * fw


if __name__ == "__main__":
    key = jax.random.PRNGKey(0)
    ks = jax.random.split(key, 6)

    # Case 1: lane-aligned NCHW (2*4*16*16 = 2048 = 4*512) -> 2-D fast path, single full block.
    B, C, H, W = 2, 4, 16, 16
    pred = jax.random.normal(ks[0], (B, C, H, W), dtype=jnp.float32)
    target = jax.random.bernoulli(ks[1], 0.3, (B, C, H, W)).astype(jnp.float32)
    loss = jax.block_until_ready(
        focal_loss_with_sigmoid(pred, target, gamma=2.0, alpha=0.25, reduction="none"))
    ref = _reference(pred, target, gamma=2.0)
    assert loss.shape == pred.shape and loss.dtype == pred.dtype
    assert jnp.allclose(loss, ref, atol=1e-5, rtol=1e-5), "mismatch (aligned 2-D path)"

    # Case 2: non-lane-aligned size (3*5*7*11 = 1155), int32 labels, integer gamma=3 ->
    # 1-D path with a partial final block (no pad, no slice) + unrolled pow path.
    pred2 = jax.random.normal(ks[2], (3, 5, 7, 11), dtype=jnp.float32)
    target2 = jax.random.bernoulli(ks[3], 0.3, (3, 5, 7, 11)).astype(jnp.int32)
    loss2 = jax.block_until_ready(
        focal_loss_with_sigmoid(pred2, target2, gamma=3.0, alpha=0.25, reduction="none"))
    ref2 = _reference(pred2, target2, gamma=3.0)
    assert jnp.allclose(loss2, ref2, atol=1e-5, rtol=1e-5), "mismatch (1-D partial-block path)"

    # Case 3: multi-block 2-D path with a partial final row block (rows=44, row_tile=8),
    # plus the 'elementwise_mean' reduction.
    pred3 = jax.random.normal(ks[4], (2, 4, 44, 64), dtype=jnp.float32)     # 22528 = 44*512
    target3 = jax.random.bernoulli(ks[5], 0.3, (2, 4, 44, 64)).astype(jnp.float32)
    loss3 = jax.block_until_ready(
        focal_loss_with_sigmoid(pred3, target3, reduction="elementwise_mean", max_row_tile=8))
    ref3 = jnp.mean(_reference(pred3, target3))
    assert jnp.allclose(loss3, ref3, atol=1e-5, rtol=1e-5), "mismatch (partial row block / mean)"

    print("KERNEL_OK")
</pallas_src>

<mosaic_0001>
module attributes {stable_mosaic.version = 11 : i64} {
  func.func @_focal_kernel(%arg0: i32, %arg1: memref<4x512xf32, #tpu.memory_space<vmem>>, %arg2: memref<4x512xf32, #tpu.memory_space<vmem>>, %arg3: memref<4x512xf32, #tpu.memory_space<vmem>>) attributes {dimension_semantics = [#tpu.dimension_semantics<parallel>], iteration_bounds = array<i64: 1>, scalar_prefetch = 0 : i64, scratch_operands = 0 : i64, tpu.core_type = #tpu.core_type<tc>, window_params = [{transform_indices = @transform_0, window_bounds = array<i64: 4, 512>}, {transform_indices = @transform_1, window_bounds = array<i64: 4, 512>}, {transform_indices = @transform_2, window_bounds = array<i64: 4, 512>}]} {
    %c0 = arith.constant 0 : index
    %c0_0 = arith.constant 0 : index
    %0 = vector.load %arg1[%c0, %c0_0] : memref<4x512xf32, #tpu.memory_space<vmem>>, vector<4x512xf32>
    %c0_1 = arith.constant 0 : index
    %c0_2 = arith.constant 0 : index
    %1 = vector.load %arg2[%c0_1, %c0_2] : memref<4x512xf32, #tpu.memory_space<vmem>>, vector<4x512xf32>
    %2 = math.absf %0 : vector<4x512xf32>
    %cst = arith.constant 0.000000e+00 : f32
    %3 = vector.broadcast %cst : f32 to vector<4x512xf32>
    %4 = arith.subf %3, %2 : vector<4x512xf32>
    %5 = math.exp %4 : vector<4x512xf32>
    %cst_3 = arith.constant 1.000000e+00 : f32
    %6 = vector.broadcast %cst_3 : f32 to vector<4x512xf32>
    %7 = arith.addf %6, %5 : vector<4x512xf32>
    %8 = tpu.reciprocal %7 : vector<4x512xf32> -> vector<4x512xf32>
    %cst_4 = arith.constant 0.000000e+00 : f32
    %9 = vector.broadcast %cst_4 : f32 to vector<4x512xf32>
    %10 = arith.cmpf oge, %0, %9 : vector<4x512xf32>
    %11 = arith.mulf %5, %8 : vector<4x512xf32>
    %12 = arith.select %10, %8, %11 : vector<4x512xi1>, vector<4x512xf32>
    %13 = arith.mulf %1, %12 : vector<4x512xf32>
    %cst_5 = arith.constant 1.000000e+00 : f32
    %14 = vector.broadcast %cst_5 : f32 to vector<4x512xf32>
    %15 = arith.subf %14, %1 : vector<4x512xf32>
    %cst_6 = arith.constant 1.000000e+00 : f32
    %16 = vector.broadcast %cst_6 : f32 to vector<4x512xf32>
    %17 = arith.subf %16, %12 : vector<4x512xf32>
    %18 = arith.mulf %15, %17 : vector<4x512xf32>
    %19 = arith.addf %13, %18 : vector<4x512xf32>
    %cst_7 = arith.constant 1.000000e+00 : f32
    %20 = vector.broadcast %cst_7 : f32 to vector<4x512xf32>
    %21 = arith.subf %20, %19 : vector<4x512xf32>
    %22 = arith.mulf %21, %21 : vector<4x512xf32>
    %cst_8 = arith.constant 2.500000e-01 : f32
    %23 = vector.broadcast %cst_8 : f32 to vector<4x512xf32>
    %24 = arith.mulf %23, %1 : vector<4x512xf32>
    %cst_9 = arith.constant 1.000000e+00 : f32
    %25 = vector.broadcast %cst_9 : f32 to vector<4x512xf32>
    %26 = arith.subf %25, %1 : vector<4x512xf32>
    %cst_10 = arith.constant 7.500000e-01 : f32
    %27 = vector.broadcast %cst_10 : f32 to vector<4x512xf32>
    %28 = arith.mulf %27, %26 : vector<4x512xf32>
    %29 = arith.addf %24, %28 : vector<4x512xf32>
    %30 = arith.mulf %29, %22 : vector<4x512xf32>
    %cst_11 = arith.constant 0.000000e+00 : f32
    %31 = vector.broadcast %cst_11 : f32 to vector<4x512xf32>
    %32 = arith.maximumf %0, %31 : vector<4x512xf32>
    %33 = arith.mulf %0, %1 : vector<4x512xf32>
    %34 = arith.subf %32, %33 : vector<4x512xf32>
    %35 = math.log1p %5 : vector<4x512xf32>
    %36 = arith.addf %34, %35 : vector<4x512xf32>
    %37 = arith.mulf %36, %30 : vector<4x512xf32>
    %c0_12 = arith.constant 0 : index
    %c0_13 = arith.constant 0 : index
    %38 = vector.load %arg3[%c0_12, %c0_13] : memref<4x512xf32, #tpu.memory_space<vmem>>, vector<4x512xf32>
    tpu.vector_store %arg3[%c0_12, %c0_13], %37 {strides = array<i32>} : memref<4x512xf32, #tpu.memory_space<vmem>>, vector<4x512xf32>,
    return
  }
  func.func @transform_0(%arg0: i32) -> (i32, i32) {
    %c0_i32 = arith.constant 0 : i32
    %c0_i32_0 = arith.constant 0 : i32
    return %arg0, %c0_i32 : i32, i32
  }
  func.func @transform_1(%arg0: i32) -> (i32, i32) {
    %c0_i32 = arith.constant 0 : i32
    %c0_i32_0 = arith.constant 0 : i32
    return %arg0, %c0_i32 : i32, i32
  }
  func.func @transform_2(%arg0: i32) -> (i32, i32) {
    %c0_i32 = arith.constant 0 : i32
    %c0_i32_0 = arith.constant 0 : i32
    return %arg0, %c0_i32 : i32, i32
  }
}

</mosaic_0001>

<llo_original>
// kernel: tpu_custom_call.1
$region0: #{tpu_custom_call.1}
  #allocation0 [shape = 'u32[]', space=smem, size = 0x4, offset = 0x4, fixed_abs, tag = 'smem constant byte address 0x4 - core index']
  #allocation1 [shape = 'u32[72,128]{1,0:T(1,128)}', space=vmem, size = 0x9000, scoped, tag = 'internal scratch']
  %s0 = inlined_call_operand.hbm [shape: f32[4,512], index: 0, kind: input, shape index: {}]
  %s1 = inlined_call_operand.hbm [shape: f32[4,512], index: 1, kind: input, shape index: {}]
  %s2 = inlined_call_operand.hbm [shape: f32[4,512], index: 2, kind: output, shape index: {}]
  %s3 = sld [smem:[#allocation0]]
  $region26: #{tpu_custom_call.1} parent=0
    _
  %s5 = ssub.s32 1, %s3
  %s6 = scalar_select 0, %s5, %s3
  $region1: #{tpu_custom_call.1} parent=0
    #allocation2 [shape = 'u8[8192]{0}', space=vmem, size = 0x2000, scoped, tag = 'input window, operand 0, single buffered']
    #allocation3 [shape = 's32[1]{0}', space=sflag, size = 0x4, scoped, tag = 'scoped memory for tpu_custom_call.1']
    #allocation4 [shape = 's32[1]{0}', space=sflag, size = 0x4, scoped, tag = 'scoped memory for tpu_custom_call.1']
    #allocation5 [shape = 'u8[8192]{0}', space=vmem, size = 0x2000, scoped, tag = 'input window, operand 1, single buffered']
    #allocation6 [shape = 's32[1]{0}', space=sflag, size = 0x4, scoped, tag = 'scoped memory for tpu_custom_call.1']
    #allocation7 [shape = 'u8[8192]{0}', space=vmem, size = 0x2000, scoped, tag = 'output window, operand 0, single buffered']
    %7 = vsyncpa [#allocation3], 0
    %8 = vsyncpa [#allocation6], 0
    %9 = vsyncpa [#allocation4], 0
    // Predicated region
    $region2: #{tpu_custom_call.1} parent=1 // pred_check
      _
    $region3: #{tpu_custom_call.1} parent=1 // pred_check_branch
      %11 = sbr.rel (0) target = $region5
    $region4: #{tpu_custom_call.1} parent=1 // pred_region
      %13 = vsyncadd [#allocation3], 0
      %s15 = sshll.u32 %s0, 4
      %s16 = int_to_ptr.hbm [resolvable:$true] %s15
      %s17 = sshll.u32 [#allocation2], 4
      %s18 = int_to_ptr.vmem [resolvable:$true] %s17
      %20 = dma.hbm_to_vmem [thread:$0]  %s16, 256, %s18, [#allocation3]
    $region5: #{tpu_custom_call.1} parent=1 // pred_fallthru
      _
    // Predicated region
    $region6: #{tpu_custom_call.1} parent=1 // pred_check
      _
    $region7: #{tpu_custom_call.1} parent=1 // pred_check_branch
      %22 = sbr.rel (0) target = $region9
    $region8: #{tpu_custom_call.1} parent=1 // pred_region
      %24 = vsyncadd [#allocation6], 0
      %s26 = sshll.u32 %s1, 4
      %s27 = int_to_ptr.hbm [resolvable:$true] %s26
      %s28 = sshll.u32 [#allocation5], 4
      %s29 = int_to_ptr.vmem [resolvable:$true] %s28
      %31 = dma.hbm_to_vmem [thread:$0]  %s27, 256, %s29, [#allocation6]
    $region9: #{tpu_custom_call.1} parent=1 // pred_fallthru
      _
    // Predicated region
    $region10: #{tpu_custom_call.1} parent=1 // pred_check
      _
    $region11: #{tpu_custom_call.1} parent=1 // pred_check_branch
      %33 = sbr.rel (0) target = $region13
    $region12: #{tpu_custom_call.1} parent=1 // pred_region
      %35 = dma.done [#allocation3], 256
    $region13: #{tpu_custom_call.1} parent=1 // pred_fallthru
      _
    // Predicated region
    $region14: #{tpu_custom_call.1} parent=1 // pred_check
      _
    $region15: #{tpu_custom_call.1} parent=1 // pred_check_branch
      %37 = sbr.rel (0) target = $region17
    $region16: #{tpu_custom_call.1} parent=1 // pred_region
      %39 = dma.done [#allocation6], 256
    $region17: #{tpu_custom_call.1} parent=1 // pred_fallthru
      _
    %v40 = vld [vmem:[#allocation2] sm:$0xff]
    %v41 = vld [vmem:[#allocation2 + $0x8] sm:$0xff]
    %v42 = vld [vmem:[#allocation5] sm:$0xff]
    %v43 = vld [vmem:[#allocation5 + $0x8] sm:$0xff]
    %v44 = vand.u32 2147483647, %v40
    %v45 = vand.u32 2147483647, %v41
    %v46 = vsub.f32 0.0, %v44
    %v47 = vsub.f32 0.0, %v45
    %v48 = vmul.f32 %v46, 1.442695
    %v49 = vpow.pop %v48
    %v50 = vmul.f32 %v47, 1.442695
    %v51 = vpow.pop %v50
    %v52 = vadd.f32 %v49, 1.0
    %v53 = vadd.f32 %v51, 1.0
    %v54 = vrcp.pop %v52
    %v55 = vmul.f32 %v52, %v54
    %v56 = vsub.f32 1.0, %v55
    %v57 = vmul.f32 %v54, %v56
    %v58 = vadd.f32 %v54, %v57
    %vm59 = vweird.f32 %v52
    %vm60 = vweird.f32 %v54
    %vm61 = vmor %vm59, %vm60
    %v62 = vsel %vm61, %v54, %v58
    %v63 = vand.u32 2147483647, %v52
    %vm64 = vcmp.eq.f32.partialorder %v63, 8.507059e+37
    %v65 = vand.u32 %v52, 2147483648
    %v66 = vor.u32 1.1754944e-38, %v65
    %v67 = vsel %vm64, %v66, %v62
    %v68 = vrcp.pop %v53
    %v69 = vmul.f32 %v53, %v68
    %v70 = vsub.f32 1.0, %v69
    %v71 = vmul.f32 %v68, %v70
    %v72 = vadd.f32 %v68, %v71
    %vm73 = vweird.f32 %v53
    %vm74 = vweird.f32 %v68
    %vm75 = vmor %vm73, %vm74
    %v76 = vsel %vm75, %v68, %v72
    %v77 = vand.u32 2147483647, %v53
    %vm78 = vcmp.eq.f32.partialorder %v77, 8.507059e+37
    %v79 = vand.u32 %v53, 2147483648
    %v80 = vor.u32 1.1754944e-38, %v79
    %v81 = vsel %vm78, %v80, %v76
    %vm82 = vcmp.ge.f32.partialorder %v40, 0.0
    %vm83 = vcmp.ge.f32.partialorder %v41, 0.0
    %v84 = vmul.f32 %v49, %v67
    %v85 = vmul.f32 %v51, %v81
    %v86 = vsel %vm82, %v67, %v84
    %v87 = vsel %vm83, %v81, %v85
    %v88 = vmul.f32 %v42, %v86
    %v89 = vmul.f32 %v43, %v87
    %v90 = vsub.f32 1.0, %v42
    %v91 = vsub.f32 1.0, %v43
    %v92 = vsub.f32 1.0, %v86
    %v93 = vsub.f32 1.0, %v87
    %v94 = vmul.f32 %v90, %v92
    %v95 = vmul.f32 %v91, %v93
    %v96 = vadd.f32 %v88, %v94
    %v97 = vadd.f32 %v89, %v95
    %v98 = vsub.f32 1.0, %v96
    %v99 = vsub.f32 1.0, %v97
    %v100 = vmul.f32 %v98, %v98
    %v101 = vmul.f32 %v99, %v99
    %v102 = vmul.f32 %v42, 0.25
    %v103 = vmul.f32 %v43, 0.25
    %v104 = vmul.f32 %v90, 0.75
    %v105 = vmul.f32 %v91, 0.75
    %v106 = vadd.f32 %v102, %v104
    %v107 = vadd.f32 %v103, %v105
    %v108 = vmul.f32 %v106, %v100
    %v109 = vmul.f32 %v107, %v101
    %v110 = vmax.f32 %v40, 0.0
    %v111 = vmax.f32 %v41, 0.0
    %v112 = vmul.f32 %v40, %v42
    %v113 = vmul.f32 %v41, %v43
    %v114 = vsub.f32 %v110, %v112
    %v115 = vsub.f32 %v111, %v113
    %v116 = vadd.f32 %v49, 1.0
    %v117 = vlog2.pop %v116
    %v118 = vmul.f32 %v117, 0.6931472
    %v119 = vmul.f32 -0.5, %v49
    %v120 = vadd.f32 %v119, 1.0
    %v121 = vmul.f32 %v120, %v49
    %v122 = vand.u32 2147483647, %v49
    %vm123 = vcmp.lt.f32.partialorder %v122, 0.0004427343
    %v124 = vsel %vm123, %v121, %v118
    %v125 = vadd.f32 %v51, 1.0
    %v126 = vlog2.pop %v125
    %v127 = vmul.f32 %v126, 0.6931472
    %v128 = vmul.f32 -0.5, %v51
    %v129 = vadd.f32 %v128, 1.0
    %v130 = vmul.f32 %v129, %v51
    %v131 = vand.u32 2147483647, %v51
    %vm132 = vcmp.lt.f32.partialorder %v131, 0.0004427343
    %v133 = vsel %vm132, %v130, %v127
    %v134 = vadd.f32 %v114, %v124
    %v135 = vadd.f32 %v115, %v133
    %v136 = vmul.f32 %v134, %v108
    %v137 = vmul.f32 %v135, %v109
    %138 = vst [vmem:[#allocation7] sm:$0xff] %v136
    %139 = vst [vmem:[#allocation7 + $0x8] sm:$0xff] %v137
    // Predicated region
    $region18: #{tpu_custom_call.1} parent=1 // pred_check
      _
    $region19: #{tpu_custom_call.1} parent=1 // pred_check_branch
      %141 = sbr.rel (0) target = $region21
    $region20: #{tpu_custom_call.1} parent=1 // pred_region
      %143 = vsyncadd [#allocation4], 0
      %s145 = sshll.u32 [#allocation7], 4
      %s146 = int_to_ptr.vmem [resolvable:$true] %s145
      %s147 = sshll.u32 %s2, 4
      %s148 = int_to_ptr.hbm [resolvable:$true] %s147
      %150 = dma.vmem_to_hbm [thread:$0]  %s146, 256, %s148, [#allocation4]
    $region21: #{tpu_custom_call.1} parent=1 // pred_fallthru
      _
    // Predicated region
    $region22: #{tpu_custom_call.1} parent=1 // pred_check
      _
    $region23: #{tpu_custom_call.1} parent=1 // pred_check_branch
      %152 = sbr.rel (0) target = $region25
    $region24: #{tpu_custom_call.1} parent=1 // pred_region
      %154 = dma.done [#allocation4], 256
    $region25: #{tpu_custom_call.1} parent=1 // pred_fallthru
      _
    %155 = vsyncpa [#allocation3], 1
    %156 = vsyncpa [#allocation6], 1
    %157 = vsyncpa [#allocation4], 1

</llo_original>
